<compile_context>
chip_gen: v5e
topology: v5e:2x2
jax: 0.10.0
libtpu: 0.0.40
codegen_flags: <defaults>
</compile_context>

<pallas_src>
import math

import jax
import jax.numpy as jnp
from jax.experimental import pallas as pl
from jax.experimental.pallas import tpu as pltpu

_DECAYS = (0.1, 0.2, 0.3, 0.5, 1.0, 1.5, 2.0)   # reference only

_LANE = 128
_S_MAX = 1024   # sublanes per grid step: 128K lanes; ~9 MiB VMEM double-buffered


def _decay_kernel(x_ref, o_ref):
    # x_ref: (2, S, 128)  x_ref[0] = x0, x_ref[1] = x1   (dense (S,128) slabs)
    # o_ref: (7, S, 128)  o_ref[j] = x0 * exp(-k_j * x1)
    x0 = x_ref[0]
    x1 = x_ref[1]

    e1 = jnp.exp(-0.1 * x1)      # exp(-0.1*x1)  (single EUP transcendental)
    e2 = e1 * e1                 # exp(-0.2*x1)
    e3 = e2 * e1                 # exp(-0.3*x1)
    e5 = e2 * e3                 # exp(-0.5*x1)
    e10 = e5 * e5                # exp(-1.0*x1)
    e15 = e10 * e5               # exp(-1.5*x1)
    e20 = e10 * e10              # exp(-2.0*x1)

    o_ref[0] = x0 * e1
    o_ref[1] = x0 * e2
    o_ref[2] = x0 * e3
    o_ref[3] = x0 * e5
    o_ref[4] = x0 * e10
    o_ref[5] = x0 * e15
    o_ref[6] = x0 * e20


def _choose_s(nblk):
    """Sublane extent S of each block (multiple of 8, or == nblk if tiny)."""
    if nblk <= 8:
        return nblk                      # single small block (dim == full extent)
    s = -(-nblk // 8)                    # aim for ~8 grid steps
    s = ((s + 7) // 8) * 8               # round up to a multiple of 8
    return max(8, min(s, _S_MAX))


def testfunction_forward(x):
    """JAX/Pallas equivalent of testfunction.forward.

    x: float array with shape (..., 2). Returns float32 array of shape (..., 7).
    """
    assert x.shape[-1] == 2, "last dim must be 2 (x0, x1)"
    lead_shape = x.shape[:-1]
    m = math.prod(lead_shape) if lead_shape else 1
    if m == 0:
        return jnp.zeros(lead_shape + (7,), dtype=jnp.float32)

    xf = x.astype(jnp.float32).reshape(m, 2)

    # Pad only to the next multiple of 128 lanes (zero pad: exp(0)=1, x0=0).
    m_pad = ((m + _LANE - 1) // _LANE) * _LANE
    if m_pad != m:
        xf = jnp.pad(xf, ((0, m_pad - m), (0, 0)))
    nblk = m_pad // _LANE

    # Channel-major, lane-dense (2, nblk, 128).  One XLA transpose copy; the
    # trailing reshape of the contiguous result is free.
    x2 = xf.T.reshape(2, nblk, _LANE)

    s = _choose_s(nblk)
    grid = (pl.cdiv(nblk, s),)           # ragged last block handled by Pallas

    out = pl.pallas_call(
        _decay_kernel,
        out_shape=jax.ShapeDtypeStruct((7, nblk, _LANE), jnp.float32),
        grid_spec=pltpu.PrefetchScalarGridSpec(
            num_scalar_prefetch=0,
            grid=grid,
            in_specs=[pl.BlockSpec((2, s, _LANE), lambda i: (0, i, 0))],
            out_specs=pl.BlockSpec((7, s, _LANE), lambda i: (0, i, 0)),
        ),
        compiler_params=pltpu.CompilerParams(
            dimension_semantics=("parallel",)),
    )(x2)

    # (7, nblk, 128) -> (7, m) -> (m, 7) -> (..., 7)
    # TODO(synk): drop this transpose if the consumer accepts (7, M) directly.
    out = out.reshape(7, m_pad)[:, :m]
    return out.T.reshape(lead_shape + (7,))


def _reference(x):
    x0 = x[..., 0]
    x1 = x[..., 1]
    return jnp.stack([x0 * jnp.exp(-k * x1) for k in _DECAYS], axis=-1)


if __name__ == "__main__":
    key = jax.random.PRNGKey(0)
    # small generic shape with last dim = 2 (the module indexes x[...,0], x[...,1])
    x = jax.random.normal(key, (2, 4, 8, 2), dtype=jnp.float32)

    out = testfunction_forward(x)
    out = jax.block_until_ready(out)

    ref = _reference(x)
    assert out.shape == (2, 4, 8, 7), out.shape
    assert jnp.allclose(out, ref, atol=1e-5, rtol=1e-5), "mismatch vs reference"
    print("KERNEL_OK")
</pallas_src>

<mosaic_0001>
module attributes {stable_mosaic.version = 11 : i64} {
  func.func @_decay_kernel(%arg0: i32, %arg1: memref<2x1x128xf32, #tpu.memory_space<vmem>>, %arg2: memref<7x1x128xf32, #tpu.memory_space<vmem>>) attributes {dimension_semantics = [#tpu.dimension_semantics<parallel>], iteration_bounds = array<i64: 1>, scalar_prefetch = 0 : i64, scratch_operands = 0 : i64, tpu.core_type = #tpu.core_type<tc>, window_params = [{transform_indices = @transform_0, window_bounds = array<i64: 2, 1, 128>}, {transform_indices = @transform_1, window_bounds = array<i64: 7, 1, 128>}]} {
    %c0 = arith.constant 0 : index
    %c0_0 = arith.constant 0 : index
    %c0_1 = arith.constant 0 : index
    %0 = vector.load %arg1[%c0, %c0_0, %c0_1] : memref<2x1x128xf32, #tpu.memory_space<vmem>>, vector<1x1x128xf32>
    %1 = vector.shape_cast %0 : vector<1x1x128xf32> to vector<1x128xf32>
    %c1 = arith.constant 1 : index
    %c0_2 = arith.constant 0 : index
    %c0_3 = arith.constant 0 : index
    %2 = vector.load %arg1[%c1, %c0_2, %c0_3] : memref<2x1x128xf32, #tpu.memory_space<vmem>>, vector<1x1x128xf32>
    %3 = vector.shape_cast %2 : vector<1x1x128xf32> to vector<1x128xf32>
    %cst = arith.constant -1.000000e-01 : f32
    %4 = vector.broadcast %cst : f32 to vector<1x128xf32>
    %5 = arith.mulf %4, %3 : vector<1x128xf32>
    %6 = math.exp %5 : vector<1x128xf32>
    %7 = arith.mulf %6, %6 : vector<1x128xf32>
    %8 = arith.mulf %7, %6 : vector<1x128xf32>
    %9 = arith.mulf %7, %8 : vector<1x128xf32>
    %10 = arith.mulf %9, %9 : vector<1x128xf32>
    %11 = arith.mulf %10, %9 : vector<1x128xf32>
    %12 = arith.mulf %10, %10 : vector<1x128xf32>
    %13 = arith.mulf %1, %6 : vector<1x128xf32>
    %c0_4 = arith.constant 0 : index
    %c0_5 = arith.constant 0 : index
    %c0_6 = arith.constant 0 : index
    %14 = vector.load %arg2[%c0_4, %c0_5, %c0_6] : memref<7x1x128xf32, #tpu.memory_space<vmem>>, vector<1x1x128xf32>
    %15 = vector.shape_cast %14 : vector<1x1x128xf32> to vector<1x128xf32>
    %16 = vector.shape_cast %13 : vector<1x128xf32> to vector<1x1x128xf32>
    tpu.vector_store %arg2[%c0_4, %c0_5, %c0_6], %16 {strides = array<i32>} : memref<7x1x128xf32, #tpu.memory_space<vmem>>, vector<1x1x128xf32>,
    %17 = arith.mulf %1, %7 : vector<1x128xf32>
    %c1_7 = arith.constant 1 : index
    %c0_8 = arith.constant 0 : index
    %c0_9 = arith.constant 0 : index
    %18 = vector.load %arg2[%c1_7, %c0_8, %c0_9] : memref<7x1x128xf32, #tpu.memory_space<vmem>>, vector<1x1x128xf32>
    %19 = vector.shape_cast %18 : vector<1x1x128xf32> to vector<1x128xf32>
    %20 = vector.shape_cast %17 : vector<1x128xf32> to vector<1x1x128xf32>
    tpu.vector_store %arg2[%c1_7, %c0_8, %c0_9], %20 {strides = array<i32>} : memref<7x1x128xf32, #tpu.memory_space<vmem>>, vector<1x1x128xf32>,
    %21 = arith.mulf %1, %8 : vector<1x128xf32>
    %c2 = arith.constant 2 : index
    %c0_10 = arith.constant 0 : index
    %c0_11 = arith.constant 0 : index
    %22 = vector.load %arg2[%c2, %c0_10, %c0_11] : memref<7x1x128xf32, #tpu.memory_space<vmem>>, vector<1x1x128xf32>
    %23 = vector.shape_cast %22 : vector<1x1x128xf32> to vector<1x128xf32>
    %24 = vector.shape_cast %21 : vector<1x128xf32> to vector<1x1x128xf32>
    tpu.vector_store %arg2[%c2, %c0_10, %c0_11], %24 {strides = array<i32>} : memref<7x1x128xf32, #tpu.memory_space<vmem>>, vector<1x1x128xf32>,
    %25 = arith.mulf %1, %9 : vector<1x128xf32>
    %c3 = arith.constant 3 : index
    %c0_12 = arith.constant 0 : index
    %c0_13 = arith.constant 0 : index
    %26 = vector.load %arg2[%c3, %c0_12, %c0_13] : memref<7x1x128xf32, #tpu.memory_space<vmem>>, vector<1x1x128xf32>
    %27 = vector.shape_cast %26 : vector<1x1x128xf32> to vector<1x128xf32>
    %28 = vector.shape_cast %25 : vector<1x128xf32> to vector<1x1x128xf32>
    tpu.vector_store %arg2[%c3, %c0_12, %c0_13], %28 {strides = array<i32>} : memref<7x1x128xf32, #tpu.memory_space<vmem>>, vector<1x1x128xf32>,
    %29 = arith.mulf %1, %10 : vector<1x128xf32>
    %c4 = arith.constant 4 : index
    %c0_14 = arith.constant 0 : index
    %c0_15 = arith.constant 0 : index
    %30 = vector.load %arg2[%c4, %c0_14, %c0_15] : memref<7x1x128xf32, #tpu.memory_space<vmem>>, vector<1x1x128xf32>
    %31 = vector.shape_cast %30 : vector<1x1x128xf32> to vector<1x128xf32>
    %32 = vector.shape_cast %29 : vector<1x128xf32> to vector<1x1x128xf32>
    tpu.vector_store %arg2[%c4, %c0_14, %c0_15], %32 {strides = array<i32>} : memref<7x1x128xf32, #tpu.memory_space<vmem>>, vector<1x1x128xf32>,
    %33 = arith.mulf %1, %11 : vector<1x128xf32>
    %c5 = arith.constant 5 : index
    %c0_16 = arith.constant 0 : index
    %c0_17 = arith.constant 0 : index
    %34 = vector.load %arg2[%c5, %c0_16, %c0_17] : memref<7x1x128xf32, #tpu.memory_space<vmem>>, vector<1x1x128xf32>
    %35 = vector.shape_cast %34 : vector<1x1x128xf32> to vector<1x128xf32>
    %36 = vector.shape_cast %33 : vector<1x128xf32> to vector<1x1x128xf32>
    tpu.vector_store %arg2[%c5, %c0_16, %c0_17], %36 {strides = array<i32>} : memref<7x1x128xf32, #tpu.memory_space<vmem>>, vector<1x1x128xf32>,
    %37 = arith.mulf %1, %12 : vector<1x128xf32>
    %c6 = arith.constant 6 : index
    %c0_18 = arith.constant 0 : index
    %c0_19 = arith.constant 0 : index
    %38 = vector.load %arg2[%c6, %c0_18, %c0_19] : memref<7x1x128xf32, #tpu.memory_space<vmem>>, vector<1x1x128xf32>
    %39 = vector.shape_cast %38 : vector<1x1x128xf32> to vector<1x128xf32>
    %40 = vector.shape_cast %37 : vector<1x128xf32> to vector<1x1x128xf32>
    tpu.vector_store %arg2[%c6, %c0_18, %c0_19], %40 {strides = array<i32>} : memref<7x1x128xf32, #tpu.memory_space<vmem>>, vector<1x1x128xf32>,
    return
  }
  func.func @transform_0(%arg0: i32) -> (i32, i32, i32) {
    %c0_i32 = arith.constant 0 : i32
    %c0_i32_0 = arith.constant 0 : i32
    %c0_i32_1 = arith.constant 0 : i32
    return %c0_i32, %arg0, %c0_i32_0 : i32, i32, i32
  }
  func.func @transform_1(%arg0: i32) -> (i32, i32, i32) {
    %c0_i32 = arith.constant 0 : i32
    %c0_i32_0 = arith.constant 0 : i32
    %c0_i32_1 = arith.constant 0 : i32
    return %c0_i32, %arg0, %c0_i32_0 : i32, i32, i32
  }
}

</mosaic_0001>

<llo_original>
// kernel: tpu_custom_call.1
$region0: #{tpu_custom_call.1}
  #allocation0 [shape = 'u32[]', space=smem, size = 0x4, offset = 0x4, fixed_abs, tag = 'smem constant byte address 0x4 - core index']
  #allocation1 [shape = 'u32[72,128]{1,0:T(1,128)}', space=vmem, size = 0x9000, scoped, tag = 'internal scratch']
  %s0 = inlined_call_operand.hbm [shape: f32[2,1,128], index: 0, kind: input, shape index: {}]
  %s1 = inlined_call_operand.hbm [shape: f32[7,1,128], index: 1, kind: output, shape index: {}]
  %s2 = sld [smem:[#allocation0]]
  $region18: #{tpu_custom_call.1} parent=0
    _
  %s4 = ssub.s32 1, %s2
  %s5 = scalar_select 0, %s4, %s2
  $region1: #{tpu_custom_call.1} parent=0
    #allocation2 [shape = 'u8[1024]{0}', space=vmem, size = 0x400, scoped, tag = 'input window, operand 0, single buffered']
    #allocation3 [shape = 's32[1]{0}', space=sflag, size = 0x4, scoped, tag = 'scoped memory for tpu_custom_call.1']
    #allocation4 [shape = 's32[1]{0}', space=sflag, size = 0x4, scoped, tag = 'scoped memory for tpu_custom_call.1']
    #allocation5 [shape = 'u8[3584]{0}', space=vmem, size = 0x1000, scoped, tag = 'output window, operand 0, single buffered']
    %6 = vsyncpa [#allocation3], 0
    %7 = vsyncpa [#allocation4], 0
    // Predicated region
    $region2: #{tpu_custom_call.1} parent=1 // pred_check
      _
    $region3: #{tpu_custom_call.1} parent=1 // pred_check_branch
      %9 = sbr.rel (0) target = $region5
    $region4: #{tpu_custom_call.1} parent=1 // pred_region
      %11 = vsyncadd [#allocation3], 0
      %s12 = sshll.u32 %s0, 4
      %s13 = int_to_ptr.hbm [resolvable:$true] %s12
      %s14 = sshll.u32 [#allocation2], 4
      %s15 = int_to_ptr.vmem [resolvable:$true] %s14
      %20 = dma.hbm_to_vmem [thread:$0]  %s13, 32, %s15, [#allocation3], 16, 16, 1
    $region5: #{tpu_custom_call.1} parent=1 // pred_fallthru
      _
    // Predicated region
    $region6: #{tpu_custom_call.1} parent=1 // pred_check
      _
    $region7: #{tpu_custom_call.1} parent=1 // pred_check_branch
      %22 = sbr.rel (0) target = $region9
    $region8: #{tpu_custom_call.1} parent=1 // pred_region
      %24 = dma.done [#allocation3], 32
    $region9: #{tpu_custom_call.1} parent=1 // pred_fallthru
      _
    %v25 = vld [vmem:[#allocation2] sm:$0x1]
    %s26 = scalar_lea.vmem [#allocation2], 1
    %v27 = vld [vmem:[%s26] sm:$0x1]
    %v28 = vmul.f32 %v27, -0.1
    %v29 = vmul.f32 %v28, 1.442695
    %v30 = vpow.pop %v29
    %v31 = vmul.f32 %v30, %v30
    %v32 = vmul.f32 %v31, %v30
    %v33 = vmul.f32 %v31, %v32
    %v34 = vmul.f32 %v33, %v33
    %v35 = vmul.f32 %v34, %v33
    %v36 = vmul.f32 %v34, %v34
    %v37 = vmul.f32 %v25, %v30
    %38 = vst [vmem:[#allocation5] sm:$0x1] %v37
    %v39 = vmul.f32 %v25, %v31
    %s40 = scalar_lea.vmem [#allocation5], 1
    %41 = vst [vmem:[%s40] sm:$0x1] %v39
    %v42 = vmul.f32 %v25, %v32
    %s43 = scalar_lea.vmem [#allocation5], 2
    %44 = vst [vmem:[%s43] sm:$0x1] %v42
    %v45 = vmul.f32 %v25, %v33
    %s46 = scalar_lea.vmem [#allocation5], 3
    %47 = vst [vmem:[%s46] sm:$0x1] %v45
    %v48 = vmul.f32 %v25, %v34
    %s49 = scalar_lea.vmem [#allocation5], 4
    %50 = vst [vmem:[%s49] sm:$0x1] %v48
    %v51 = vmul.f32 %v25, %v35
    %s52 = scalar_lea.vmem [#allocation5], 5
    %53 = vst [vmem:[%s52] sm:$0x1] %v51
    %v54 = vmul.f32 %v25, %v36
    %s55 = scalar_lea.vmem [#allocation5], 6
    %56 = vst [vmem:[%s55] sm:$0x1] %v54
    // Predicated region
    $region10: #{tpu_custom_call.1} parent=1 // pred_check
      _
    $region11: #{tpu_custom_call.1} parent=1 // pred_check_branch
      %58 = sbr.rel (0) target = $region13
    $region12: #{tpu_custom_call.1} parent=1 // pred_region
      %60 = vsyncadd [#allocation4], 0
      %s61 = sshll.u32 [#allocation5], 4
      %s62 = int_to_ptr.vmem [resolvable:$true] %s61
      %s63 = sshll.u32 %s1, 4
      %s64 = int_to_ptr.hbm [resolvable:$true] %s63
      %69 = dma.vmem_to_hbm [thread:$0]  %s62, 112, %s64, [#allocation4], 16, 16, 1
    $region13: #{tpu_custom_call.1} parent=1 // pred_fallthru
      _
    // Predicated region
    $region14: #{tpu_custom_call.1} parent=1 // pred_check
      _
    $region15: #{tpu_custom_call.1} parent=1 // pred_check_branch
      %71 = sbr.rel (0) target = $region17
    $region16: #{tpu_custom_call.1} parent=1 // pred_region
      %73 = dma.done [#allocation4], 112
    $region17: #{tpu_custom_call.1} parent=1 // pred_fallthru
      _
    %74 = vsyncpa [#allocation3], 1
    %75 = vsyncpa [#allocation4], 1

</llo_original>
